<compile_context>
chip_gen: v6e
topology: v6e:2x2x1
jax: 0.10.0
libtpu: 0.0.40
codegen_flags: <defaults>
</compile_context>

<pallas_src>
import functools

import jax
import jax.numpy as jnp
from jax.experimental import pallas as pl
from jax.experimental.pallas import tpu as pltpu

_OUT_LANES = 128  # lane-dense output slab width (>= action_dim + 1)


def _leaky_relu(x, slope=0.01):
    return jnp.maximum(x, slope * x)


def _round_up(x, m):
    return ((x + m - 1) // m) * m


def _cdiv(a, b):
    return -(-a // b)


# --------------------------------------------------------------------------- #
# Kernel: one batch tile through the fused actor+critic MLP.
# --------------------------------------------------------------------------- #
def actor_critic_kernel(action_dim, state_ref, w1_ref, w2_ref, w3_ref, w4_ref,
                        bias_ref, out_ref):
    cd = w1_ref.dtype                       # matmul compute dtype (bf16)
    x = state_ref[...].astype(cd)           # [TB, S]

    b = bias_ref[...]                       # [4, 256] f32 packed biases
    b1 = b[0:1, 0:128]
    b2 = b[1:2, 0:256]
    b3 = b[2:3, 0:128]
    b4 = b[3:4, 0:_OUT_LANES]

    def linear(h, w_ref, bias):
        acc = jnp.dot(h.astype(cd), w_ref[...],
                      preferred_element_type=jnp.float32)
        return acc + bias                   # f32 accumulation + f32 bias

    # fused layers: [actor | critic] blocks travel together in the lane dim
    h = jnp.tanh(linear(x, w1_ref, b1))     # [TB, 128] = [a64 | c64]
    h = jnp.tanh(linear(h, w2_ref, b2))     # [TB, 256] = [a128 | c128]
    h = _leaky_relu(linear(h, w3_ref, b3))  # [TB, 128] = [a64 | c64]
    z = linear(h, w4_ref, b4)               # [TB, 128] = [logits(A) | value | 0pad]

    # masked softmax over the logit lanes only; value lane passes through
    lane = jax.lax.broadcasted_iota(jnp.int32, z.shape, 1)
    is_logit = lane < action_dim
    is_value = lane == action_dim

    neg_big = jnp.float32(-1e30)
    zl = jnp.where(is_logit, z, neg_big)
    m = jnp.max(zl, axis=-1, keepdims=True)
    e = jnp.where(is_logit, jnp.exp(zl - m), 0.0)
    s = jnp.sum(e, axis=-1, keepdims=True)
    probs = e * pl.reciprocal(s, approx=True)   # divide on the EUP slot

    out_ref[...] = jnp.where(is_logit, probs, jnp.where(is_value, z, 0.0))


# --------------------------------------------------------------------------- #
# Wrapper
# --------------------------------------------------------------------------- #
def actor_critic_forward(state, fused, *, action_dim, tb_cap=512):
    """Returns (action_probs [B, A], state_values [B, 1])."""
    B, S = state.shape
    A = int(action_dim)
    assert A + 1 <= _OUT_LANES

    # Batch tiling: multiple of 8 sublanes, capped for VMEM safety on all
    # generations, and sized to minimize padding waste (e.g. B=520 -> TB=264,
    # grid=2 instead of TB=512, grid=2 with 49% padding).
    B8 = _round_up(max(B, 1), 8)
    num_tiles = _cdiv(B8, tb_cap)
    TB = _round_up(_cdiv(B8, num_tiles), 8)
    B_pad = num_tiles * TB
    if B_pad != B:
        state = jnp.pad(state, ((0, B_pad - B), (0, 0)))

    w1, w2, w3, w4, bias = (fused["w1"], fused["w2"], fused["w3"],
                            fused["w4"], fused["bias"])

    param_bytes = sum(int(a.size) * a.dtype.itemsize
                      for a in (w1, w2, w3, w4, bias))
    cost = pl.CostEstimate(
        flops=2 * B_pad * (S * 128 + 128 * 256 + 256 * 128 + 128 * _OUT_LANES),
        transcendentals=B_pad * (128 + 256 + A + 1),
        bytes_accessed=param_bytes + B_pad * (S + _OUT_LANES) * 4,
    )

    grid = (num_tiles,)
    out = pl.pallas_call(
        functools.partial(actor_critic_kernel, A),
        out_shape=jax.ShapeDtypeStruct((B_pad, _OUT_LANES), jnp.float32),
        grid=grid,
        in_specs=[
            pl.BlockSpec((TB, S), lambda i: (i, 0)),             # state tile
            pl.BlockSpec((S, 128), lambda i: (0, 0)),            # fused W1
            pl.BlockSpec((128, 256), lambda i: (0, 0)),          # fused W2
            pl.BlockSpec((256, 128), lambda i: (0, 0)),          # fused W3
            pl.BlockSpec((128, _OUT_LANES), lambda i: (0, 0)),   # fused W4
            pl.BlockSpec((4, 256), lambda i: (0, 0)),            # packed biases
        ],
        out_specs=pl.BlockSpec((TB, _OUT_LANES), lambda i: (i, 0)),
        compiler_params=pltpu.CompilerParams(
            dimension_semantics=("parallel",)),                  # v7x megacore
        cost_estimate=cost,
    )(state, w1, w2, w3, w4, bias)

    probs = out[:B, :A]
    values = out[:B, A:A + 1]
    return probs, values


# --------------------------------------------------------------------------- #
# Parameter construction
# --------------------------------------------------------------------------- #
def init_params(key, state_dim, action_dim):
    """PyTorch-style nn.Linear init: U(-1/sqrt(fan_in), 1/sqrt(fan_in))."""
    def linear(key, fan_in, fan_out):
        kw, kb = jax.random.split(key)
        bound = 1.0 / jnp.sqrt(fan_in)
        w = jax.random.uniform(kw, (fan_in, fan_out), jnp.float32, -bound, bound)
        b = jax.random.uniform(kb, (1, fan_out), jnp.float32, -bound, bound)
        return w, b

    keys = jax.random.split(key, 8)
    p = {}
    # actor: S->64->128->64->A
    p["aw1"], p["ab1"] = linear(keys[0], state_dim, 64)
    p["aw2"], p["ab2"] = linear(keys[1], 64, 128)
    p["aw3"], p["ab3"] = linear(keys[2], 128, 64)
    p["aw4"], p["ab4"] = linear(keys[3], 64, action_dim)
    # critic: S->64->128->64->1
    p["cw1"], p["cb1"] = linear(keys[4], state_dim, 64)
    p["cw2"], p["cb2"] = linear(keys[5], 64, 128)
    p["cw3"], p["cb3"] = linear(keys[6], 128, 64)
    p["cw4"], p["cb4"] = linear(keys[7], 64, 1)
    return p


def fuse_params(p, action_dim, param_dtype=jnp.bfloat16):
    """Build the fused (concat / block-diagonal) arrays once, host-side."""
    A = int(action_dim)

    w1 = jnp.concatenate([p["aw1"], p["cw1"]], axis=1)                # [S, 128]
    b1 = jnp.concatenate([p["ab1"], p["cb1"]], axis=1)                # [1, 128]

    w2 = jnp.zeros((128, 256), jnp.float32)
    w2 = w2.at[:64, :128].set(p["aw2"]).at[64:, 128:].set(p["cw2"])   # [128, 256]
    b2 = jnp.concatenate([p["ab2"], p["cb2"]], axis=1)                # [1, 256]

    w3 = jnp.zeros((256, 128), jnp.float32)
    w3 = w3.at[:128, :64].set(p["aw3"]).at[128:, 64:].set(p["cw3"])   # [256, 128]
    b3 = jnp.concatenate([p["ab3"], p["cb3"]], axis=1)                # [1, 128]

    w4 = jnp.zeros((128, _OUT_LANES), jnp.float32)
    w4 = w4.at[:64, :A].set(p["aw4"]).at[64:, A:A + 1].set(p["cw4"])  # [128, 128]
    b4 = jnp.zeros((1, _OUT_LANES), jnp.float32)
    b4 = b4.at[:, :A].set(p["ab4"]).at[:, A:A + 1].set(p["cb4"])

    bias = jnp.zeros((4, 256), jnp.float32)
    bias = bias.at[0, :128].set(b1[0])
    bias = bias.at[1, :256].set(b2[0])
    bias = bias.at[2, :128].set(b3[0])
    bias = bias.at[3, :_OUT_LANES].set(b4[0])

    return {
        "w1": w1.astype(param_dtype),
        "w2": w2.astype(param_dtype),
        "w3": w3.astype(param_dtype),
        "w4": w4.astype(param_dtype),
        "bias": bias,  # biases stay f32 (added to f32 accumulators)
    }


# --------------------------------------------------------------------------- #
# Pure-JAX reference (same bf16-quantized weights, f32 math)
# --------------------------------------------------------------------------- #
def reference_forward(state, p, param_dtype=jnp.bfloat16):
    q = lambda k: p[k].astype(param_dtype).astype(jnp.float32)
    x = state
    h = jnp.tanh(x @ q("aw1") + p["ab1"])
    h = jnp.tanh(h @ q("aw2") + p["ab2"])
    h = _leaky_relu(h @ q("aw3") + p["ab3"])
    probs = jax.nn.softmax(h @ q("aw4") + p["ab4"], axis=-1)
    c = jnp.tanh(x @ q("cw1") + p["cb1"])
    c = jnp.tanh(c @ q("cw2") + p["cb2"])
    c = _leaky_relu(c @ q("cw3") + p["cb3"])
    values = c @ q("cw4") + p["cb4"]
    return probs, values


def _check(state, params, fused, action_dim, **kwargs):
    probs, values = jax.block_until_ready(
        actor_critic_forward(state, fused, action_dim=action_dim, **kwargs))
    ref_probs, ref_values = reference_forward(state, params)

    assert probs.shape == (state.shape[0], action_dim)
    assert values.shape == (state.shape[0], 1)
    # bf16 matmul inputs + approx reciprocal -> relaxed tolerance vs f32 reference
    assert jnp.allclose(probs, ref_probs, atol=2e-2, rtol=2e-2), (
        float(jnp.max(jnp.abs(probs - ref_probs))))
    assert jnp.allclose(values, ref_values, atol=2e-2, rtol=2e-2), (
        float(jnp.max(jnp.abs(values - ref_values))))
    assert jnp.allclose(jnp.sum(probs, axis=-1), 1.0, atol=1e-2)


if __name__ == "__main__":
    key = jax.random.PRNGKey(0)
    k_state, k_state2, k_params = jax.random.split(key, 3)

    batch, state_dim, action_dim = 8, 16, 4
    params = init_params(k_params, state_dim, action_dim)
    fused = fuse_params(params, action_dim)           # bf16 fused weights

    # single-tile path (act / act_exploit style small batches)
    state = jax.random.normal(k_state, (batch, state_dim), jnp.float32)
    _check(state, params, fused, action_dim)

    # multi-tile grid + batch-padding path (evaluate-style batches)
    state2 = jax.random.normal(k_state2, (50, state_dim), jnp.float32)
    _check(state2, params, fused, action_dim, tb_cap=16)

    print("KERNEL_OK")
</pallas_src>

<mosaic_0001>
module attributes {stable_mosaic.version = 11 : i64} {
  func.func @actor_critic_kernel(%arg0: i32, %arg1: memref<8x16xf32, #tpu.memory_space<vmem>>, %arg2: memref<16x128xbf16, #tpu.memory_space<vmem>>, %arg3: memref<128x256xbf16, #tpu.memory_space<vmem>>, %arg4: memref<256x128xbf16, #tpu.memory_space<vmem>>, %arg5: memref<128x128xbf16, #tpu.memory_space<vmem>>, %arg6: memref<4x256xf32, #tpu.memory_space<vmem>>, %arg7: memref<8x128xf32, #tpu.memory_space<vmem>>) attributes {dimension_semantics = [#tpu.dimension_semantics<parallel>], iteration_bounds = array<i64: 1>, scalar_prefetch = 0 : i64, scratch_operands = 0 : i64, tpu.core_type = #tpu.core_type<tc>, window_params = [{transform_indices = @transform_0, window_bounds = array<i64: 8, 16>}, {pipeline_mode = #tpu.pipeline_mode<synchronous>, transform_indices = @transform_1, window_bounds = array<i64: 16, 128>}, {pipeline_mode = #tpu.pipeline_mode<synchronous>, transform_indices = @transform_2, window_bounds = array<i64: 128, 256>}, {pipeline_mode = #tpu.pipeline_mode<synchronous>, transform_indices = @transform_3, window_bounds = array<i64: 256, 128>}, {pipeline_mode = #tpu.pipeline_mode<synchronous>, transform_indices = @transform_4, window_bounds = array<i64: 128, 128>}, {pipeline_mode = #tpu.pipeline_mode<synchronous>, transform_indices = @transform_5, window_bounds = array<i64: 4, 256>}, {transform_indices = @transform_6, window_bounds = array<i64: 8, 128>}]} {
    %c0 = arith.constant 0 : index
    %c0_0 = arith.constant 0 : index
    %0 = vector.load %arg1[%c0, %c0_0] : memref<8x16xf32, #tpu.memory_space<vmem>>, vector<8x16xf32>
    %1 = arith.truncf %0 : vector<8x16xf32> to vector<8x16xbf16>
    %c0_1 = arith.constant 0 : index
    %c0_2 = arith.constant 0 : index
    %2 = vector.load %arg6[%c0_1, %c0_2] : memref<4x256xf32, #tpu.memory_space<vmem>>, vector<4x256xf32>
    %3 = vector.extract_strided_slice %2 {offsets = [0, 0], sizes = [1, 128], strides = [1, 1]} : vector<4x256xf32> to vector<1x128xf32>
    %4 = vector.extract_strided_slice %2 {offsets = [1, 0], sizes = [1, 256], strides = [1, 1]} : vector<4x256xf32> to vector<1x256xf32>
    %5 = vector.extract_strided_slice %2 {offsets = [2, 0], sizes = [1, 128], strides = [1, 1]} : vector<4x256xf32> to vector<1x128xf32>
    %6 = vector.extract_strided_slice %2 {offsets = [3, 0], sizes = [1, 128], strides = [1, 1]} : vector<4x256xf32> to vector<1x128xf32>
    %c0_3 = arith.constant 0 : index
    %c0_4 = arith.constant 0 : index
    %7 = vector.load %arg2[%c0_3, %c0_4] : memref<16x128xbf16, #tpu.memory_space<vmem>>, vector<16x128xbf16>
    %cst = arith.constant dense<0.000000e+00> : vector<8x128xf32>
    %8 = tpu.matmul %1, %7, %cst {dimension_numbers = #tpu.dot_dimension_numbers<[1], [0], [0], [1], [0, 0, 1, 1], [], []>} : vector<8x16xbf16>, vector<16x128xbf16>, vector<8x128xf32> -> vector<8x128xf32>
    %9 = vector.broadcast %3 : vector<1x128xf32> to vector<8x128xf32>
    %10 = arith.addf %8, %9 : vector<8x128xf32>
    %11 = math.tanh %10 : vector<8x128xf32>
    %12 = arith.truncf %11 : vector<8x128xf32> to vector<8x128xbf16>
    %c0_5 = arith.constant 0 : index
    %c0_6 = arith.constant 0 : index
    %13 = vector.load %arg3[%c0_5, %c0_6] : memref<128x256xbf16, #tpu.memory_space<vmem>>, vector<128x256xbf16>
    %cst_7 = arith.constant dense<0.000000e+00> : vector<8x256xf32>
    %14 = tpu.matmul %12, %13, %cst_7 {dimension_numbers = #tpu.dot_dimension_numbers<[1], [0], [0], [1], [0, 0, 1, 1], [], []>} : vector<8x128xbf16>, vector<128x256xbf16>, vector<8x256xf32> -> vector<8x256xf32>
    %15 = vector.broadcast %4 : vector<1x256xf32> to vector<8x256xf32>
    %16 = arith.addf %14, %15 : vector<8x256xf32>
    %17 = math.tanh %16 : vector<8x256xf32>
    %18 = arith.truncf %17 : vector<8x256xf32> to vector<8x256xbf16>
    %c0_8 = arith.constant 0 : index
    %c0_9 = arith.constant 0 : index
    %19 = vector.load %arg4[%c0_8, %c0_9] : memref<256x128xbf16, #tpu.memory_space<vmem>>, vector<256x128xbf16>
    %cst_10 = arith.constant dense<0.000000e+00> : vector<8x128xf32>
    %20 = tpu.matmul %18, %19, %cst_10 {dimension_numbers = #tpu.dot_dimension_numbers<[1], [0], [0], [1], [0, 0, 1, 1], [], []>} : vector<8x256xbf16>, vector<256x128xbf16>, vector<8x128xf32> -> vector<8x128xf32>
    %21 = vector.broadcast %5 : vector<1x128xf32> to vector<8x128xf32>
    %22 = arith.addf %20, %21 : vector<8x128xf32>
    %cst_11 = arith.constant 0.00999999977 : f32
    %23 = vector.broadcast %cst_11 : f32 to vector<8x128xf32>
    %24 = arith.mulf %23, %22 : vector<8x128xf32>
    %25 = arith.maximumf %22, %24 : vector<8x128xf32>
    %26 = arith.truncf %25 : vector<8x128xf32> to vector<8x128xbf16>
    %c0_12 = arith.constant 0 : index
    %c0_13 = arith.constant 0 : index
    %27 = vector.load %arg5[%c0_12, %c0_13] : memref<128x128xbf16, #tpu.memory_space<vmem>>, vector<128x128xbf16>
    %cst_14 = arith.constant dense<0.000000e+00> : vector<8x128xf32>
    %28 = tpu.matmul %26, %27, %cst_14 {dimension_numbers = #tpu.dot_dimension_numbers<[1], [0], [0], [1], [0, 0, 1, 1], [], []>} : vector<8x128xbf16>, vector<128x128xbf16>, vector<8x128xf32> -> vector<8x128xf32>
    %29 = vector.broadcast %6 : vector<1x128xf32> to vector<8x128xf32>
    %30 = arith.addf %28, %29 : vector<8x128xf32>
    %31 = tpu.iota {dimensions = array<i32: 1>} : vector<8x128xi32>
    %c4_i32 = arith.constant 4 : i32
    %32 = vector.broadcast %c4_i32 : i32 to vector<8x128xi32>
    %33 = arith.cmpi slt, %31, %32 : vector<8x128xi32>
    %c4_i32_15 = arith.constant 4 : i32
    %34 = vector.broadcast %c4_i32_15 : i32 to vector<8x128xi32>
    %35 = arith.cmpi eq, %31, %34 : vector<8x128xi32>
    %cst_16 = arith.constant -1.000000e+30 : f32
    %36 = vector.broadcast %cst_16 : f32 to vector<8x128xf32>
    %37 = arith.select %33, %30, %36 : vector<8x128xi1>, vector<8x128xf32>
    %cst_17 = arith.constant dense<0xFF800000> : vector<8xf32>
    %38 = vector.multi_reduction <maximumf>, %37, %cst_17 [1] : vector<8x128xf32> to vector<8xf32>
    %39 = vector.shape_cast %38 : vector<8xf32> to vector<8x1xf32>
    %40 = vector.broadcast %39 : vector<8x1xf32> to vector<8x128xf32>
    %41 = arith.subf %37, %40 : vector<8x128xf32>
    %42 = math.exp %41 : vector<8x128xf32>
    %cst_18 = arith.constant 0.000000e+00 : f32
    %43 = vector.broadcast %cst_18 : f32 to vector<8x128xf32>
    %44 = arith.select %33, %42, %43 : vector<8x128xi1>, vector<8x128xf32>
    %cst_19 = arith.constant dense<0.000000e+00> : vector<8xf32>
    %45 = vector.multi_reduction <add>, %44, %cst_19 [1] : vector<8x128xf32> to vector<8xf32>
    %46 = vector.shape_cast %45 : vector<8xf32> to vector<8x1xf32>
    %47 = tpu.reciprocal %46 {approx = true} : vector<8x1xf32> -> vector<8x1xf32>
    %48 = vector.broadcast %47 : vector<8x1xf32> to vector<8x128xf32>
    %49 = arith.mulf %44, %48 : vector<8x128xf32>
    %cst_20 = arith.constant 0.000000e+00 : f32
    %50 = vector.broadcast %cst_20 : f32 to vector<8x128xf32>
    %51 = arith.select %35, %30, %50 : vector<8x128xi1>, vector<8x128xf32>
    %52 = arith.select %33, %49, %51 : vector<8x128xi1>, vector<8x128xf32>
    %c0_21 = arith.constant 0 : index
    %c0_22 = arith.constant 0 : index
    %53 = vector.load %arg7[%c0_21, %c0_22] : memref<8x128xf32, #tpu.memory_space<vmem>>, vector<8x128xf32>
    tpu.vector_store %arg7[%c0_21, %c0_22], %52 {strides = array<i32>} : memref<8x128xf32, #tpu.memory_space<vmem>>, vector<8x128xf32>,
    return
  }
  func.func @transform_0(%arg0: i32) -> (i32, i32) {
    %c0_i32 = arith.constant 0 : i32
    %c0_i32_0 = arith.constant 0 : i32
    return %arg0, %c0_i32 : i32, i32
  }
  func.func @transform_1(%arg0: i32) -> (i32, i32) {
    %c0_i32 = arith.constant 0 : i32
    %c0_i32_0 = arith.constant 0 : i32
    %c0_i32_1 = arith.constant 0 : i32
    return %c0_i32, %c0_i32_0 : i32, i32
  }
  func.func @transform_2(%arg0: i32) -> (i32, i32) {
    %c0_i32 = arith.constant 0 : i32
    %c0_i32_0 = arith.constant 0 : i32
    %c0_i32_1 = arith.constant 0 : i32
    return %c0_i32, %c0_i32_0 : i32, i32
  }
  func.func @transform_3(%arg0: i32) -> (i32, i32) {
    %c0_i32 = arith.constant 0 : i32
    %c0_i32_0 = arith.constant 0 : i32
    %c0_i32_1 = arith.constant 0 : i32
    return %c0_i32, %c0_i32_0 : i32, i32
  }
  func.func @transform_4(%arg0: i32) -> (i32, i32) {
    %c0_i32 = arith.constant 0 : i32
    %c0_i32_0 = arith.constant 0 : i32
    %c0_i32_1 = arith.constant 0 : i32
    return %c0_i32, %c0_i32_0 : i32, i32
  }
  func.func @transform_5(%arg0: i32) -> (i32, i32) {
    %c0_i32 = arith.constant 0 : i32
    %c0_i32_0 = arith.constant 0 : i32
    %c0_i32_1 = arith.constant 0 : i32
    return %c0_i32, %c0_i32_0 : i32, i32
  }
  func.func @transform_6(%arg0: i32) -> (i32, i32) {
    %c0_i32 = arith.constant 0 : i32
    %c0_i32_0 = arith.constant 0 : i32
    return %arg0, %c0_i32 : i32, i32
  }
}

</mosaic_0001>

<llo_original>
// kernel: tpu_custom_call.1
$region0: #{tpu_custom_call.1}
  #allocation0 [shape = 'u32[]', space=smem, size = 0x4, offset = 0x4, fixed_abs, tag = 'smem constant byte address 0x4 - core index']
  #allocation1 [shape = 'u32[144,128]{1,0:T(1,128)}', space=vmem, size = 0x12000, scoped, tag = 'internal scratch']
  %s0 = inlined_call_operand.hbm [shape: f32[8,16], index: 0, kind: input, shape index: {}]
  %s1 = inlined_call_operand.hbm [shape: bf16[16,128], index: 1, kind: input, shape index: {}]
  %s2 = inlined_call_operand.hbm [shape: bf16[128,256], index: 2, kind: input, shape index: {}]
  %s3 = inlined_call_operand.hbm [shape: bf16[256,128], index: 3, kind: input, shape index: {}]
  %s4 = inlined_call_operand.hbm [shape: bf16[128,128], index: 4, kind: input, shape index: {}]
  %s5 = inlined_call_operand.vmem [shape: f32[4,256], index: 5, kind: input, shape index: {}]
  %s6 = inlined_call_operand.hbm [shape: f32[8,128], index: 6, kind: output, shape index: {}]
  %s7 = sld [smem:[#allocation0]]
  $region54: #{tpu_custom_call.1} parent=0
    _
  %s9 = ssub.s32 1, %s7
  %s10 = scalar_select 0, %s9, %s7
  $region1: #{tpu_custom_call.1} parent=0
    #allocation2 [shape = 'u8[4096]{0}', space=vmem, size = 0x1000, scoped, tag = 'input window, operand 0, single buffered']
    #allocation3 [shape = 's32[1]{0}', space=sflag, size = 0x4, scoped, tag = 'scoped memory for tpu_custom_call.1']
    #allocation4 [shape = 's32[1]{0}', space=sflag, size = 0x4, scoped, tag = 'scoped memory for tpu_custom_call.1']
    #allocation5 [shape = 'u8[4096]{0}', space=vmem, size = 0x1000, scoped, tag = 'input window, operand 1, single buffered']
    #allocation6 [shape = 's32[1]{0}', space=sflag, size = 0x4, scoped, tag = 'scoped memory for tpu_custom_call.1']
    #allocation7 [shape = 'u8[65536]{0}', space=vmem, size = 0x10000, scoped, tag = 'input window, operand 2, single buffered']
    #allocation8 [shape = 'u8[65536]{0}', space=vmem, size = 0x10000, scoped, tag = 'input window, operand 3, single buffered']
    #allocation9 [shape = 's32[1]{0}', space=sflag, size = 0x4, scoped, tag = 'scoped memory for tpu_custom_call.1']
    #allocation10 [shape = 'u8[32768]{0}', space=vmem, size = 0x8000, scoped, tag = 'input window, operand 4, single buffered']
    #allocation11 [shape = 'u8[4096]{0}', space=vmem, size = 0x1000, scoped, tag = 'output window, operand 0, single buffered']
    %11 = vsyncpa [#allocation3], 0
    %12 = vsyncpa [#allocation6], 0
    %13 = vsyncpa [#allocation9], 0
    %14 = vsyncpa [#allocation4], 0
    // Predicated region
    $region2: #{tpu_custom_call.1} parent=1 // pred_check
      _
    $region3: #{tpu_custom_call.1} parent=1 // pred_check_branch
      %16 = sbr.rel (0) target = $region5
    $region4: #{tpu_custom_call.1} parent=1 // pred_region
      %s18 = ssub.s32 128, 128
      %19 = vsyncadd [#allocation3], %s18
      %s21 = sshll.u32 [#allocation2], 4
      %s22 = int_to_ptr.vmem [resolvable:$true] %s21
      %24 = dma.hbm_to_vmem [thread:$0]  %s0, 128, %s22, [#allocation3]
    $region5: #{tpu_custom_call.1} parent=1 // pred_fallthru
      _
    // Predicated region
    $region6: #{tpu_custom_call.1} parent=1 // pred_check
      _
    $region7: #{tpu_custom_call.1} parent=1 // pred_check_branch
      %26 = sbr.rel (0) target = $region9
    $region8: #{tpu_custom_call.1} parent=1 // pred_region
      %s28 = ssub.s32 128, 128
      %29 = vsyncadd [#allocation6], %s28
      %s30 = sshll.u32 [#allocation5], 4
      %s31 = int_to_ptr.vmem [resolvable:$true] %s30
      %36 = dma.hbm_to_vmem [thread:$0]  %s1, 128, %s31, [#allocation6], 64, 64, 4
    $region9: #{tpu_custom_call.1} parent=1 // pred_fallthru
      _
    // Predicated region
    $region10: #{tpu_custom_call.1} parent=1 // pred_check
      _
    $region11: #{tpu_custom_call.1} parent=1 // pred_check_branch
      %38 = sbr.rel (0) target = $region13
    $region12: #{tpu_custom_call.1} parent=1 // pred_region
      %s40 = ssub.s32 2048, 2048
      %41 = vsyncadd [#allocation6], %s40
      %s42 = sshll.u32 [#allocation7], 4
      %s43 = int_to_ptr.vmem [resolvable:$true] %s42
      %48 = dma.hbm_to_vmem [thread:$0]  %s2, 2048, %s43, [#allocation6], 128, 128, 8
    $region13: #{tpu_custom_call.1} parent=1 // pred_fallthru
      _
    // Predicated region
    $region14: #{tpu_custom_call.1} parent=1 // pred_check
      _
    $region15: #{tpu_custom_call.1} parent=1 // pred_check_branch
      %50 = sbr.rel (0) target = $region17
    $region16: #{tpu_custom_call.1} parent=1 // pred_region
      %s52 = ssub.s32 2048, 2048
      %53 = vsyncadd [#allocation9], %s52
      %s54 = sshll.u32 [#allocation8], 4
      %s55 = int_to_ptr.vmem [resolvable:$true] %s54
      %60 = dma.hbm_to_vmem [thread:$0]  %s3, 2048, %s55, [#allocation9], 64, 64, 4
    $region17: #{tpu_custom_call.1} parent=1 // pred_fallthru
      _
    // Predicated region
    $region18: #{tpu_custom_call.1} parent=1 // pred_check
      _
    $region19: #{tpu_custom_call.1} parent=1 // pred_check_branch
      %62 = sbr.rel (0) target = $region21
    $region20: #{tpu_custom_call.1} parent=1 // pred_region
      %s64 = ssub.s32 1024, 1024
      %65 = vsyncadd [#allocation9], %s64
      %s66 = sshll.u32 [#allocation10], 4
      %s67 = int_to_ptr.vmem [resolvable:$true] %s66
      %72 = dma.hbm_to_vmem [thread:$0]  %s4, 1024, %s67, [#allocation9], 64, 64, 4
    $region21: #{tpu_custom_call.1} parent=1 // pred_fallthru
      _
    // Predicated region
    $region22: #{tpu_custom_call.1} parent=1 // pred_check
      _
    $region23: #{tpu_custom_call.1} parent=1 // pred_check_branch
      %74 = sbr.rel (0) target = $region25
    $region24: #{tpu_custom_call.1} parent=1 // pred_region
      _
    $region25: #{tpu_custom_call.1} parent=1 // pred_fallthru
      _
    // Predicated region
    $region26: #{tpu_custom_call.1} parent=1 // pred_check
      _
    $region27: #{tpu_custom_call.1} parent=1 // pred_check_branch
      %76 = sbr.rel (0) target = $region29
    $region28: #{tpu_custom_call.1} parent=1 // pred_region
      %77 = dma.done [#allocation3], 128
    $region29: #{tpu_custom_call.1} parent=1 // pred_fallthru
      _
    // Predicated region
    $region30: #{tpu_custom_call.1} parent=1 // pred_check
      _
    $region31: #{tpu_custom_call.1} parent=1 // pred_check_branch
      %79 = sbr.rel (0) target = $region33
    $region32: #{tpu_custom_call.1} parent=1 // pred_region
      %80 = dma.done [#allocation6], 128
    $region33: #{tpu_custom_call.1} parent=1 // pred_fallthru
      _
    // Predicated region
    $region34: #{tpu_custom_call.1} parent=1 // pred_check
      _
    $region35: #{tpu_custom_call.1} parent=1 // pred_check_branch
      %82 = sbr.rel (0) target = $region37
    $region36: #{tpu_custom_call.1} parent=1 // pred_region
      %83 = dma.done [#allocation6], 2048
    $region37: #{tpu_custom_call.1} parent=1 // pred_fallthru
      _
    // Predicated region
    $region38: #{tpu_custom_call.1} parent=1 // pred_check
      _
    $region39: #{tpu_custom_call.1} parent=1 // pred_check_branch
      %85 = sbr.rel (0) target = $region41
    $region40: #{tpu_custom_call.1} parent=1 // pred_region
      %86 = dma.done [#allocation9], 2048
    $region41: #{tpu_custom_call.1} parent=1 // pred_fallthru
      _
    // Predicated region
    $region42: #{tpu_custom_call.1} parent=1 // pred_check
      _
    $region43: #{tpu_custom_call.1} parent=1 // pred_check_branch
      %88 = sbr.rel (0) target = $region45
    $region44: #{tpu_custom_call.1} parent=1 // pred_region
      %89 = dma.done [#allocation9], 1024
    $region45: #{tpu_custom_call.1} parent=1 // pred_fallthru
      _
    %v91 = vld [vmem:[#allocation2] sm:$0xff]
    %v92 = vpack.c.bf16 %v91, %v91
    %v93 = vld [vmem:[%s5] sm:$0xff]
    %v94 = vld [vmem:[#allocation5] sm:$0xf]
    %v95 = vld [vmem:[#allocation5 + $0x4] sm:$0xf]
    %v96 = vlaneseq
    %v97 = vshrl.u32 %v96, 7
    %v98 = vsub.s32 0, %v97
    %v99 = vrot.slane %v93, %v98
    %v102 = vunpack.c.l.b16 %v94
    %v103 = vunpack.c.l.b16 %v95
    %v104 = vpack.c.b16 %v103, %v102
    %vm106 = vcmask 130048
    %v108 = vsel %vm106, %v92, 0
    %110 = vmatprep.subr.bf16.mxu0 0
    %111 = vmatpush1.bf16.msra.mxu0 0
    %112 = vmatprep.subr.bf16.mxu0 0
    %113 = vmatpush1.bf16.msra.mxu0 0
    %114 = vmatprep.subr.bf16.mxu0 0
    %115 = vmatpush1.bf16.msra.mxu0 0
    %116 = vmatprep.subr.bf16.mxu0 0
    %117 = vmatpush1.bf16.msra.mxu0 0
    %118 = vmatprep.subr.bf16.mxu0 0
    %119 = vmatpush1.bf16.msra.mxu0 0
    %120 = vmatprep.subr.bf16.mxu0 0
    %121 = vmatpush1.bf16.msra.mxu0 0
    %122 = vmatprep.subr.bf16.mxu0 0
    %123 = vmatpush1.bf16.msra.mxu0 0
    %124 = vmatprep.subr.bf16.mxu0 0
    %125 = vmatpush1.bf16.msra.mxu0 %v104
    %126 = vmatprep.subr.bf16.mxu0 0
    %127 = vmatpush2.bf16.msra.mxu0 0
    %128 = vmatprep.subr.bf16.mxu0 0
    %129 = vmatpush2.bf16.msra.mxu0 0
    %130 = vmatprep.subr.bf16.mxu0 0
    %131 = vmatpush2.bf16.msra.mxu0 0
    %132 = vmatprep.subr.bf16.mxu0 0
    %133 = vmatpush2.bf16.msra.mxu0 0
    %134 = vmatprep.subr.bf16.mxu0 0
    %135 = vmatpush2.bf16.msra.mxu0 0
    %136 = vmatprep.subr.bf16.mxu0 0
    %137 = vmatpush2.bf16.msra.mxu0 0
    %138 = vmatprep.subr.bf16.mxu0 0
    %139 = vmatpush2.bf16.msra.mxu0 0
    %140 = vmatprep.subr.bf16.mxu0 0
    %141 = vmatpush2.bf16.msra.mxu0 0
    %142 = vmatprep.mubr.bf16.mxu0 0
    %143 = vmatmul.mubr.bf16.gmra.mxu0 %v108
    %v144 = vpop.f32.mrf.mxu0
    %v145 = vadd.f32 %v99, %v144
    %v146 = vpop.f32.mrf.mxu0
    %v147 = vpop.f32.mrf.mxu0
    %v148 = vpop.f32.mrf.mxu0
    %149 = vdwg.mxu0
    %v150 = vtanh.pop %v145
    %v151 = vpack.c.bf16 %v150, %v150
    %v152 = vld [vmem:[#allocation7] sm:$0xff]
    %v153 = vld [vmem:[#allocation7 + $0x8] sm:$0xff]
    %v154 = vld [vmem:[#allocation7 + $0x10] sm:$0xff]
    %v155 = vld [vmem:[#allocation7 + $0x18] sm:$0xff]
    %v156 = vld [vmem:[#allocation7 + $0x20] sm:$0xff]
    %v157 = vld [vmem:[#allocation7 + $0x28] sm:$0xff]
    %v158 = vld [vmem:[#allocation7 + $0x30] sm:$0xff]
    %v159 = vld [vmem:[#allocation7 + $0x38] sm:$0xff]
    %v160 = vld [vmem:[#allocation7 + $0x40] sm:$0xff]
    %v161 = vld [vmem:[#allocation7 + $0x48] sm:$0xff]
    %v162 = vld [vmem:[#allocation7 + $0x50] sm:$0xff]
    %v163 = vld [vmem:[#allocation7 + $0x58] sm:$0xff]
    %v164 = vld [vmem:[#allocation7 + $0x60] sm:$0xff]
    %v165 = vld [vmem:[#allocation7 + $0x68] sm:$0xff]
    %v166 = vld [vmem:[#allocation7 + $0x70] sm:$0xff]
    %v167 = vld [vmem:[#allocation7 + $0x78] sm:$0xff]
    %v169 = vlaneseq
    %v170 = vshrl.u32 %v169, 7
    %v171 = vsub.s32 1, %v170
    %v172 = vrot.slane %v93, %v171
    %v173 = vlaneseq
    %v174 = vshrl.u32 %v173, 7
    %v175 = vsub.s32 5, %v174
    %v176 = vrot.slane %v93, %v175
    %v179 = vlaneseq
    %v180 = vshrl.u32 %v179, 7
    %v181 = vsub.s32 1, %v180
    %v182 = vrot.slane %v172, %v181
    %v183 = vlaneseq
    %v184 = vshrl.u32 %v183, 7
    %v185 = vsub.s32 1, %v184
    %v186 = vrot.slane %v176, %v185
    %v203 = vunpack.c.l.b16 %v152
    %v204 = vunpack.c.h.b16 %v152
    %v205 = vunpack.c.l.b16 %v153
    %v206 = vunpack.c.h.b16 %v153
    %v207 = vunpack.c.l.b16 %v154
    %v208 = vunpack.c.h.b16 %v154
    %v209 = vunpack.c.l.b16 %v155
    %v210 = vunpack.c.h.b16 %v155
    %v211 = vunpack.c.l.b16 %v156
    %v212 = vunpack.c.h.b16 %v156
    %v213 = vunpack.c.l.b16 %v157
    %v214 = vunpack.c.h.b16 %v157
    %v215 = vunpack.c.l.b16 %v158
    %v216 = vunpack.c.h.b16 %v158
    %v217 = vunpack.c.l.b16 %v159
    %v218 = vunpack.c.h.b16 %v159
    %v219 = vunpack.c.l.b16 %v160
    %v220 = vunpack.c.h.b16 %v160
    %v221 = vunpack.c.l.b16 %v161
    %v222 = vunpack.c.h.b16 %v161
    %v223 = vunpack.c.l.b16 %v162
    %v224 = vunpack.c.h.b16 %v162
    %v225 = vunpack.c.l.b16 %v163
    %v226 = vunpack.c.h.b16 %v163
    %v227 = vunpack.c.l.b16 %v164
    %v228 = vunpack.c.h.b16 %v164
    %v229 = vunpack.c.l.b16 %v165
    %v230 = vunpack.c.h.b16 %v165
    %v231 = vunpack.c.l.b16 %v166
    %v232 = vunpack.c.h.b16 %v166
    %v233 = vunpack.c.l.b16 %v167
    %v234 = vunpack.c.h.b16 %v167
    %v235 = vpack.c.b16 %v205, %v203
    %v236 = vpack.c.b16 %v206, %v204
    %v237 = vpack.c.b16 %v209, %v207
    %v238 = vpack.c.b16 %v210, %v208
    %v239 = vpack.c.b16 %v213, %v211
    %v240 = vpack.c.b16 %v214, %v212
    %v241 = vpack.c.b16 %v217, %v215
    %v242 = vpack.c.b16 %v218, %v216
    %v243 = vpack.c.b16 %v221, %v219
    %v244 = vpack.c.b16 %v222, %v220
    %v245 = vpack.c.b16 %v225, %v223
    %v246 = vpack.c.b16 %v226, %v224
    %v247 = vpack.c.b16 %v229, %v227
    %v248 = vpack.c.b16 %v230, %v228
    %v249 = vpack.c.b16 %v233, %v231
    %v250 = vpack.c.b16 %v234, %v232
    %267 = vmatprep.subr.bf16.mxu0 %v250
    %268 = vmatpush1.bf16.msra.mxu0 %v249
    %269 = vmatprep.subr.bf16.mxu0 %v248
    %270 = vmatpush1.bf16.msra.mxu0 %v247
    %271 = vmatprep.subr.bf16.mxu0 %v246
    %272 = vmatpush1.bf16.msra.mxu0 %v245
    %273 = vmatprep.subr.bf16.mxu0 %v244
    %274 = vmatpush1.bf16.msra.mxu0 %v243
    %275 = vmatprep.subr.bf16.mxu0 %v242
    %276 = vmatpush1.bf16.msra.mxu0 %v241
    %277 = vmatprep.subr.bf16.mxu0 %v240
    %278 = vmatpush1.bf16.msra.mxu0 %v239
    %279 = vmatprep.subr.bf16.mxu0 %v238
    %280 = vmatpush1.bf16.msra.mxu0 %v237
    %281 = vmatprep.subr.bf16.mxu0 %v236
    %282 = vmatpush1.bf16.msra.mxu0 %v235
    %283 = vmatprep.subr.bf16.mxu0 0
    %284 = vmatpush2.bf16.msra.mxu0 0
    %285 = vmatprep.subr.bf16.mxu0 0
    %286 = vmatpush2.bf16.msra.mxu0 0
    %287 = vmatprep.subr.bf16.mxu0 0
    %288 = vmatpush2.bf16.msra.mxu0 0
    %289 = vmatprep.subr.bf16.mxu0 0
    %290 = vmatpush2.bf16.msra.mxu0 0
    %291 = vmatprep.subr.bf16.mxu0 0
    %292 = vmatpush2.bf16.msra.mxu0 0
    %293 = vmatprep.subr.bf16.mxu0 0
    %294 = vmatpush2.bf16.msra.mxu0 0
    %295 = vmatprep.subr.bf16.mxu0 0
    %296 = vmatpush2.bf16.msra.mxu0 0
    %297 = vmatprep.subr.bf16.mxu0 0
    %298 = vmatpush2.bf16.msra.mxu0 0
    %299 = vmatprep.mubr.bf16.mxu0 0
    %300 = vmatmul.mubr.bf16.gmra.mxu0 %v151
    %v301 = vpop.f32.mrf.mxu0
    %v302 = vadd.f32 %v182, %v301
    %v303 = vpop.f32.mrf.mxu0
    %v304 = vadd.f32 %v186, %v303
    %v305 = vpop.f32.mrf.mxu0
    %v306 = vpop.f32.mrf.mxu0
    %307 = vdwg.mxu0
    %v308 = vtanh.pop %v302
    %v309 = vtanh.pop %v304
    %v310 = vpack.c.bf16 %v308, %v308
    %v311 = vpack.c.bf16 %v309, %v309
    %v312 = vld [vmem:[#allocation8] sm:$0xf]
    %v313 = vld [vmem:[#allocation8 + $0x4] sm:$0xf]
    %v314 = vld [vmem:[#allocation8 + $0x8] sm:$0xf]
    %v315 = vld [vmem:[#allocation8 + $0xc] sm:$0xf]
    %v316 = vld [vmem:[#allocation8 + $0x10] sm:$0xf]
    %v317 = vld [vmem:[#allocation8 + $0x14] sm:$0xf]
    %v318 = vld [vmem:[#allocation8 + $0x18] sm:$0xf]
    %v319 = vld [vmem:[#allocation8 + $0x1c] sm:$0xf]
    %v320 = vld [vmem:[#allocation8 + $0x20] sm:$0xf]
    %v321 = vld [vmem:[#allocation8 + $0x24] sm:$0xf]
    %v322 = vld [vmem:[#allocation8 + $0x28] sm:$0xf]
    %v323 = vld [vmem:[#allocation8 + $0x2c] sm:$0xf]
    %v324 = vld [vmem:[#allocation8 + $0x30] sm:$0xf]
    %v325 = vld [vmem:[#allocation8 + $0x34] sm:$0xf]
    %v326 = vld [vmem:[#allocation8 + $0x38] sm:$0xf]
    %v327 = vld [vmem:[#allocation8 + $0x3c] sm:$0xf]
    %v328 = vld [vmem:[#allocation8 + $0x40] sm:$0xf]
    %v329 = vld [vmem:[#allocation8 + $0x44] sm:$0xf]
    %v330 = vld [vmem:[#allocation8 + $0x48] sm:$0xf]
    %v331 = vld [vmem:[#allocation8 + $0x4c] sm:$0xf]
    %v332 = vld [vmem:[#allocation8 + $0x50] sm:$0xf]
    %v333 = vld [vmem:[#allocation8 + $0x54] sm:$0xf]
    %v334 = vld [vmem:[#allocation8 + $0x58] sm:$0xf]
    %v335 = vld [vmem:[#allocation8 + $0x5c] sm:$0xf]
    %v336 = vld [vmem:[#allocation8 + $0x60] sm:$0xf]
    %v337 = vld [vmem:[#allocation8 + $0x64] sm:$0xf]
    %v338 = vld [vmem:[#allocation8 + $0x68] sm:$0xf]
    %v339 = vld [vmem:[#allocation8 + $0x6c] sm:$0xf]
    %v340 = vld [vmem:[#allocation8 + $0x70] sm:$0xf]
    %v341 = vld [vmem:[#allocation8 + $0x74] sm:$0xf]
    %v342 = vld [vmem:[#allocation8 + $0x78] sm:$0xf]
    %v343 = vld [vmem:[#allocation8 + $0x7c] sm:$0xf]
    %v344 = vlaneseq
    %v345 = vshrl.u32 %v344, 7
    %v346 = vsub.s32 2, %v345
    %v347 = vrot.slane %v93, %v346
    %v380 = vunpack.c.l.b16 %v312
    %v381 = vunpack.c.l.b16 %v313
    %v382 = vunpack.c.l.b16 %v314
    %v383 = vunpack.c.l.b16 %v315
    %v384 = vunpack.c.l.b16 %v316
    %v385 = vunpack.c.l.b16 %v317
    %v386 = vunpack.c.l.b16 %v318
    %v387 = vunpack.c.l.b16 %v319
    %v388 = vunpack.c.l.b16 %v320
    %v389 = vunpack.c.l.b16 %v321
    %v390 = vunpack.c.l.b16 %v322
    %v391 = vunpack.c.l.b16 %v323
    %v392 = vunpack.c.l.b16 %v324
    %v393 = vunpack.c.l.b16 %v325
    %v394 = vunpack.c.l.b16 %v326
    %v395 = vunpack.c.l.b16 %v327
    %v396 = vunpack.c.l.b16 %v328
    %v397 = vunpack.c.l.b16 %v329
    %v398 = vunpack.c.l.b16 %v330
    %v399 = vunpack.c.l.b16 %v331
    %v400 = vunpack.c.l.b16 %v332
    %v401 = vunpack.c.l.b16 %v333
    %v402 = vunpack.c.l.b16 %v334
    %v403 = vunpack.c.l.b16 %v335
    %v404 = vunpack.c.l.b16 %v336
    %v405 = vunpack.c.l.b16 %v337
    %v406 = vunpack.c.l.b16 %v338
    %v407 = vunpack.c.l.b16 %v339
    %v408 = vunpack.c.l.b16 %v340
    %v409 = vunpack.c.l.b16 %v341
    %v410 = vunpack.c.l.b16 %v342
    %v411 = vunpack.c.l.b16 %v343
    %v412 = vpack.c.b16 %v381, %v380
    %v413 = vpack.c.b16 %v383, %v382
    %v414 = vpack.c.b16 %v385, %v384
    %v415 = vpack.c.b16 %v387, %v386
    %v416 = vpack.c.b16 %v389, %v388
    %v417 = vpack.c.b16 %v391, %v390
    %v418 = vpack.c.b16 %v393, %v392
    %v419 = vpack.c.b16 %v395, %v394
    %v420 = vpack.c.b16 %v397, %v396
    %v421 = vpack.c.b16 %v399, %v398
    %v422 = vpack.c.b16 %v401, %v400
    %v423 = vpack.c.b16 %v403, %v402
    %v424 = vpack.c.b16 %v405, %v404
    %v425 = vpack.c.b16 %v407, %v406
    %v426 = vpack.c.b16 %v409, %v408
    %v427 = vpack.c.b16 %v411, %v410
    %444 = vmatprep.subr.bf16.mxu0 0
    %445 = vmatpush1.bf16.msra.mxu0 %v419
    %446 = vmatprep.subr.bf16.mxu0 0
    %447 = vmatpush1.bf16.msra.mxu0 %v418
    %448 = vmatprep.subr.bf16.mxu0 0
    %449 = vmatpush1.bf16.msra.mxu0 %v417
    %450 = vmatprep.subr.bf16.mxu0 0
    %451 = vmatpush1.bf16.msra.mxu0 %v416
    %452 = vmatprep.subr.bf16.mxu0 0
    %453 = vmatpush1.bf16.msra.mxu0 %v415
    %454 = vmatprep.subr.bf16.mxu0 0
    %455 = vmatpush1.bf16.msra.mxu0 %v414
    %456 = vmatprep.subr.bf16.mxu0 0
    %457 = vmatpush1.bf16.msra.mxu0 %v413
    %458 = vmatprep.subr.bf16.mxu0 0
    %459 = vmatpush1.bf16.msra.mxu0 %v412
    %460 = vmatprep.subr.bf16.mxu0 0
    %461 = vmatpush2.bf16.msra.mxu0 %v427
    %462 = vmatprep.subr.bf16.mxu0 0
    %463 = vmatpush2.bf16.msra.mxu0 %v426
    %464 = vmatprep.subr.bf16.mxu0 0
    %465 = vmatpush2.bf16.msra.mxu0 %v425
    %466 = vmatprep.subr.bf16.mxu0 0
    %467 = vmatpush2.bf16.msra.mxu0 %v424
    %468 = vmatprep.subr.bf16.mxu0 0
    %469 = vmatpush2.bf16.msra.mxu0 %v423
    %470 = vmatprep.subr.bf16.mxu0 0
    %471 = vmatpush2.bf16.msra.mxu0 %v422
    %472 = vmatprep.subr.bf16.mxu0 0
    %473 = vmatpush2.bf16.msra.mxu0 %v421
    %474 = vmatprep.subr.bf16.mxu0 0
    %475 = vmatpush2.bf16.msra.mxu0 %v420
    %476 = vmatprep.mubr.bf16.mxu0 %v311
    %477 = vmatmul.mubr.bf16.gmra.mxu0 %v310
    %v478 = vpop.f32.mrf.mxu0
    %v479 = vadd.f32 %v347, %v478
    %v480 = vpop.f32.mrf.mxu0
    %v481 = vpop.f32.mrf.mxu0
    %v482 = vpop.f32.mrf.mxu0
    %483 = vdwg.mxu0
    %v484 = vmul.f32 %v479, 0.01
    %v485 = vmax.f32 %v479, %v484
    %v486 = vpack.c.bf16 %v485, %v485
    %v487 = vld [vmem:[#allocation10] sm:$0xf]
    %v488 = vld [vmem:[#allocation10 + $0x4] sm:$0xf]
    %v489 = vld [vmem:[#allocation10 + $0x8] sm:$0xf]
    %v490 = vld [vmem:[#allocation10 + $0xc] sm:$0xf]
    %v491 = vld [vmem:[#allocation10 + $0x10] sm:$0xf]
    %v492 = vld [vmem:[#allocation10 + $0x14] sm:$0xf]
    %v493 = vld [vmem:[#allocation10 + $0x18] sm:$0xf]
    %v494 = vld [vmem:[#allocation10 + $0x1c] sm:$0xf]
    %v495 = vld [vmem:[#allocation10 + $0x20] sm:$0xf]
    %v496 = vld [vmem:[#allocation10 + $0x24] sm:$0xf]
    %v497 = vld [vmem:[#allocation10 + $0x28] sm:$0xf]
    %v498 = vld [vmem:[#allocation10 + $0x2c] sm:$0xf]
    %v499 = vld [vmem:[#allocation10 + $0x30] sm:$0xf]
    %v500 = vld [vmem:[#allocation10 + $0x34] sm:$0xf]
    %v501 = vld [vmem:[#allocation10 + $0x38] sm:$0xf]
    %v502 = vld [vmem:[#allocation10 + $0x3c] sm:$0xf]
    %v503 = vlaneseq
    %v504 = vshrl.u32 %v503, 7
    %v505 = vsub.s32 3, %v504
    %v506 = vrot.slane %v93, %v505
    %v523 = vunpack.c.l.b16 %v487
    %v524 = vunpack.c.l.b16 %v488
    %v525 = vunpack.c.l.b16 %v489
    %v526 = vunpack.c.l.b16 %v490
    %v527 = vunpack.c.l.b16 %v491
    %v528 = vunpack.c.l.b16 %v492
    %v529 = vunpack.c.l.b16 %v493
    %v530 = vunpack.c.l.b16 %v494
    %v531 = vunpack.c.l.b16 %v495
    %v532 = vunpack.c.l.b16 %v496
    %v533 = vunpack.c.l.b16 %v497
    %v534 = vunpack.c.l.b16 %v498
    %v535 = vunpack.c.l.b16 %v499
    %v536 = vunpack.c.l.b16 %v500
    %v537 = vunpack.c.l.b16 %v501
    %v538 = vunpack.c.l.b16 %v502
    %v539 = vpack.c.b16 %v524, %v523
    %v540 = vpack.c.b16 %v526, %v525
    %v541 = vpack.c.b16 %v528, %v527
    %v542 = vpack.c.b16 %v530, %v529
    %v543 = vpack.c.b16 %v532, %v531
    %v544 = vpack.c.b16 %v534, %v533
    %v545 = vpack.c.b16 %v536, %v535
    %v546 = vpack.c.b16 %v538, %v537
    %555 = vmatprep.subr.bf16.mxu0 0
    %556 = vmatpush1.bf16.msra.mxu0 %v546
    %557 = vmatprep.subr.bf16.mxu0 0
    %558 = vmatpush1.bf16.msra.mxu0 %v545
    %559 = vmatprep.subr.bf16.mxu0 0
    %560 = vmatpush1.bf16.msra.mxu0 %v544
    %561 = vmatprep.subr.bf16.mxu0 0
    %562 = vmatpush1.bf16.msra.mxu0 %v543
    %563 = vmatprep.subr.bf16.mxu0 0
    %564 = vmatpush1.bf16.msra.mxu0 %v542
    %565 = vmatprep.subr.bf16.mxu0 0
    %566 = vmatpush1.bf16.msra.mxu0 %v541
    %567 = vmatprep.subr.bf16.mxu0 0
    %568 = vmatpush1.bf16.msra.mxu0 %v540
    %569 = vmatprep.subr.bf16.mxu0 0
    %570 = vmatpush1.bf16.msra.mxu0 %v539
    %571 = vmatprep.subr.bf16.mxu0 0
    %572 = vmatpush2.bf16.msra.mxu0 0
    %573 = vmatprep.subr.bf16.mxu0 0
    %574 = vmatpush2.bf16.msra.mxu0 0
    %575 = vmatprep.subr.bf16.mxu0 0
    %576 = vmatpush2.bf16.msra.mxu0 0
    %577 = vmatprep.subr.bf16.mxu0 0
    %578 = vmatpush2.bf16.msra.mxu0 0
    %579 = vmatprep.subr.bf16.mxu0 0
    %580 = vmatpush2.bf16.msra.mxu0 0
    %581 = vmatprep.subr.bf16.mxu0 0
    %582 = vmatpush2.bf16.msra.mxu0 0
    %583 = vmatprep.subr.bf16.mxu0 0
    %584 = vmatpush2.bf16.msra.mxu0 0
    %585 = vmatprep.subr.bf16.mxu0 0
    %586 = vmatpush2.bf16.msra.mxu0 0
    %587 = vmatprep.mubr.bf16.mxu0 0
    %588 = vmatmul.mubr.bf16.gmra.mxu0 %v486
    %v589 = vpop.f32.mrf.mxu0
    %v590 = vadd.f32 %v506, %v589
    %v591 = vpop.f32.mrf.mxu0
    %v592 = vpop.f32.mrf.mxu0
    %v593 = vpop.f32.mrf.mxu0
    %594 = vdwg.mxu0
    %v595 = vlaneseq
    %v596 = vand.u32 %v595, 127
    %vm597 = vcmp.lt.s32.totalorder %v596, 4
    %vm598 = vcmp.eq.s32.totalorder %v596, 4
    %v599 = vsel %vm597, %v590, -1e+30
    %600 = vmax.xlane.f32.xlu0 %v599
    %v601 = vpop.xlane.xlu0 %600
    %v602 = vsub.f32 %v599, %v601
    %v603 = vmul.f32 %v602, 1.442695
    %v604 = vpow.pop %v603
    %v605 = vsel %vm597, %v604, 0.0
    %606 = vadd.xlane.f32.xlu0 %v605
    %v607 = vpop.xlane.xlu0 %606
    %v608 = vrcp.pop %v607
    %v609 = vmul.f32 %v605, %v608
    %v610 = vsel %vm598, %v590, 0.0
    %v611 = vsel %vm597, %v609, %v610
    %612 = vst [vmem:[#allocation11] sm:$0xff] %v611
    // Predicated region
    $region46: #{tpu_custom_call.1} parent=1 // pred_check
      _
    $region47: #{tpu_custom_call.1} parent=1 // pred_check_branch
      %614 = sbr.rel (0) target = $region49
    $region48: #{tpu_custom_call.1} parent=1 // pred_region
      %s616 = ssub.s32 128, 128
      %617 = vsyncadd [#allocation4], %s616
      %s619 = sshll.u32 [#allocation11], 4
      %s620 = int_to_ptr.vmem [resolvable:$true] %s619
      %622 = dma.vmem_to_hbm [thread:$0]  %s620, 128, %s6, [#allocation4]
    $region49: #{tpu_custom_call.1} parent=1 // pred_fallthru
      _
    // Predicated region
    $region50: #{tpu_custom_call.1} parent=1 // pred_check
      _
    $region51: #{tpu_custom_call.1} parent=1 // pred_check_branch
      %624 = sbr.rel (0) target = $region53
    $region52: #{tpu_custom_call.1} parent=1 // pred_region
      %625 = dma.done [#allocation4], 128
    $region53: #{tpu_custom_call.1} parent=1 // pred_fallthru
      _
    %626 = vsyncpa [#allocation3], 1
    %627 = vsyncpa [#allocation6], 1
    %628 = vsyncpa [#allocation9], 1
    %629 = vsyncpa [#allocation4], 1

</llo_original>
